<compile_context>
chip_gen: v5e
topology: v5e:2x2
jax: 0.10.0
libtpu: 0.0.40
codegen_flags: <defaults>
</compile_context>

<pallas_src>
import functools

import jax
import jax.numpy as jnp
from jax.experimental import pallas as pl
from jax.experimental.pallas import tpu as pltpu


def _round_up(x, m):
    return (x + m - 1) // m * m


def _patch_embed_kernel(p_ref, w_ref, b_ref, o_ref):
    # p_ref: [tm, K] (bf16)   w_ref: [E_pad, K] (bf16)   b_ref: [1, E_pad] (f32)
    # o_ref: [tm, E_pad]
    acc = jax.lax.dot_general(
        p_ref[...], w_ref[...],
        dimension_numbers=(((1,), (1,)), ((), ())),   # contract trailing K axes
        preferred_element_type=jnp.float32,
    )
    o_ref[...] = (acc + b_ref[...]).astype(o_ref.dtype)


def _choose_tile_m(M, K, E_pad, in_bytes, out_bytes,
                   budget_bytes=24 * 1024 * 1024, tm_cap=512):
    """Largest M-tile (16-aligned, capped) whose double-buffered working set
    fits a conservative VMEM budget valid on v5e/v6e/v7x."""
    fixed = 2 * (E_pad * K * in_bytes + E_pad * 4)           # resident W + bias
    per_row = 2 * (K * in_bytes + E_pad * out_bytes)         # A tile + out tile
    tm = max(16, min(tm_cap, (budget_bytes - fixed) // per_row))
    tm = max(16, (tm // 16) * 16)
    tm = min(tm, _round_up(M, 16))   # never larger than the (padded) row count
    return int(tm)


def patch_embed_forward(x, weight, bias, patch_size, *, use_bf16=True):
    """x: [B, C, H, W] (NCHW, like PyTorch). weight: [E, C, P, P]. bias: [E]."""
    B, C, H, W = x.shape
    E = weight.shape[0]
    P = patch_size
    assert H % P == 0 and W % P == 0
    GH, GW = H // P, W // P
    num_patches = GH * GW
    K = C * P * P
    M = B * num_patches

    compute_dtype = jnp.bfloat16 if use_bf16 else x.dtype
    in_bytes = jnp.dtype(compute_dtype).itemsize
    out_bytes = jnp.dtype(x.dtype).itemsize

    # --- layout glue: extract non-overlapping patches in (C, ph, pw) order ---
    # [B, C, GH, P, GW, P] -> [B, GH, GW, C, P, P] -> [B*GH*GW, C*P*P]
    # (allow_input_fusion below lets XLA fuse this into the input DMA instead
    # of materializing patches[M, K] in HBM.)
    patches = x.reshape(B, C, GH, P, GW, P)
    patches = jnp.transpose(patches, (0, 2, 4, 1, 3, 5)).reshape(M, K)
    patches = patches.astype(compute_dtype)

    # Conv weight stays [E, K]; no per-call transpose is materialized.
    w2d = weight.reshape(E, K).astype(compute_dtype)

    # Lane-dense stores: pad E to a multiple of 128.
    E_pad = _round_up(E, 128)
    if E_pad != E:
        w2d = jnp.pad(w2d, ((0, E_pad - E), (0, 0)))
        b2d = jnp.pad(bias.astype(jnp.float32), (0, E_pad - E)).reshape(1, E_pad)
    else:
        b2d = bias.astype(jnp.float32).reshape(1, E_pad)

    # --- tile the row (patch) axis -------------------------------------------
    tm = _choose_tile_m(M, K, E_pad, in_bytes, out_bytes)
    M_pad = _round_up(M, tm)
    if M_pad != M:
        patches = jnp.pad(patches, ((0, M_pad - M), (0, 0)))

    grid = (M_pad // tm,)

    out2d = pl.pallas_call(
        _patch_embed_kernel,
        out_shape=jax.ShapeDtypeStruct((M_pad, E_pad), x.dtype),
        grid_spec=pltpu.PrefetchScalarGridSpec(
            num_scalar_prefetch=0,
            grid=grid,
            in_specs=[
                pl.BlockSpec((tm, K), lambda i: (i, 0)),      # patch tile
                pl.BlockSpec((E_pad, K), lambda i: (0, 0)),   # weight (resident)
                pl.BlockSpec((1, E_pad), lambda i: (0, 0)),   # bias   (resident)
            ],
            out_specs=pl.BlockSpec((tm, E_pad), lambda i: (i, 0)),
        ),
        compiler_params=pltpu.CompilerParams(
            dimension_semantics=("parallel",),    # shard M across v7x's 2 TCs
            vmem_limit_bytes=48 * 1024 * 1024,    # headroom below v7x's 64 MiB
            allow_input_fusion=[True, False, False],
        ),
        cost_estimate=pl.CostEstimate(
            flops=2 * M_pad * K * E_pad,
            transcendentals=0,
            bytes_accessed=(M_pad * K + E_pad * K) * in_bytes
            + (M_pad * E_pad + E_pad) * out_bytes,
        ),
    )(patches, w2d, b2d)

    # Strip padding; [B*num_patches, E] -> [B, num_patches, E]
    # (== conv.flatten(2).transpose(1, 2); norm is Identity)
    return out2d[:M, :E].reshape(B, num_patches, E)


def reference_forward(x, weight, bias, patch_size):
    """Pure-JAX reference equal to PyTorch Conv2d(stride=kernel) + flatten/transpose."""
    out = jax.lax.conv_general_dilated(
        x, weight,
        window_strides=(patch_size, patch_size),
        padding="VALID",
        dimension_numbers=("NCHW", "OIHW", "NCHW"),
    ) + bias.reshape(1, -1, 1, 1)
    B, E, GH, GW = out.shape
    return jnp.transpose(out.reshape(B, E, GH * GW), (0, 2, 1))


if __name__ == "__main__":
    # Small shapes consistent with the module: img 16x16, patch 4, C=4, E=32.
    B, C, H, W = 2, 4, 16, 16
    P = 4
    E = 32

    key = jax.random.PRNGKey(0)
    kx, kw, kb = jax.random.split(key, 3)
    x = jax.random.normal(kx, (B, C, H, W), dtype=jnp.float32)
    # Deterministic synthetic parameters (nn.Conv2d(in_chans, embed_dim, P, P)).
    weight = jax.random.normal(kw, (E, C, P, P), dtype=jnp.float32) * 0.02
    bias = jax.random.normal(kb, (E,), dtype=jnp.float32) * 0.02

    fwd = jax.jit(functools.partial(patch_embed_forward, patch_size=P))
    out = jax.block_until_ready(fwd(x, weight, bias))

    ref = reference_forward(x, weight, bias, P)
    assert out.shape == (B, (H // P) * (W // P), E), out.shape
    # bf16 matmul operands with f32 accumulation vs. pure-f32 conv reference.
    assert jnp.allclose(out, ref, atol=2e-2, rtol=2e-2), float(
        jnp.max(jnp.abs(out - ref)))

    print("KERNEL_OK")
</pallas_src>

<mosaic_0001>
module attributes {stable_mosaic.version = 11 : i64} {
  func.func @_patch_embed_kernel(%arg0: i32, %arg1: memref<32x64xbf16, #tpu.memory_space<vmem>>, %arg2: memref<128x64xbf16, #tpu.memory_space<vmem>>, %arg3: memref<1x128xf32, #tpu.memory_space<vmem>>, %arg4: memref<32x128xf32, #tpu.memory_space<vmem>>) attributes {dimension_semantics = [#tpu.dimension_semantics<parallel>], iteration_bounds = array<i64: 1>, scalar_prefetch = 0 : i64, scratch_operands = 0 : i64, tpu.core_type = #tpu.core_type<tc>, window_params = [{transform_indices = @transform_0, window_bounds = array<i64: 32, 64>}, {pipeline_mode = #tpu.pipeline_mode<synchronous>, transform_indices = @transform_1, window_bounds = array<i64: 128, 64>}, {pipeline_mode = #tpu.pipeline_mode<synchronous>, transform_indices = @transform_2, window_bounds = array<i64: 1, 128>}, {transform_indices = @transform_3, window_bounds = array<i64: 32, 128>}]} {
    %c0 = arith.constant 0 : index
    %c0_0 = arith.constant 0 : index
    %0 = vector.load %arg1[%c0, %c0_0] : memref<32x64xbf16, #tpu.memory_space<vmem>>, vector<32x64xbf16>
    %c0_1 = arith.constant 0 : index
    %c0_2 = arith.constant 0 : index
    %1 = vector.load %arg2[%c0_1, %c0_2] : memref<128x64xbf16, #tpu.memory_space<vmem>>, vector<128x64xbf16>
    %cst = arith.constant dense<0.000000e+00> : vector<32x128xf32>
    %2 = tpu.matmul %0, %1, %cst {dimension_numbers = #tpu.dot_dimension_numbers<[1], [1], [0], [0], [0, 0, 1, 0], [], []>} : vector<32x64xbf16>, vector<128x64xbf16>, vector<32x128xf32> -> vector<32x128xf32>
    %c0_3 = arith.constant 0 : index
    %c0_4 = arith.constant 0 : index
    %3 = vector.load %arg3[%c0_3, %c0_4] : memref<1x128xf32, #tpu.memory_space<vmem>>, vector<1x128xf32>
    %4 = vector.broadcast %3 : vector<1x128xf32> to vector<32x128xf32>
    %5 = arith.addf %2, %4 : vector<32x128xf32>
    %c0_5 = arith.constant 0 : index
    %c0_6 = arith.constant 0 : index
    %6 = vector.load %arg4[%c0_5, %c0_6] : memref<32x128xf32, #tpu.memory_space<vmem>>, vector<32x128xf32>
    tpu.vector_store %arg4[%c0_5, %c0_6], %5 {strides = array<i32>} : memref<32x128xf32, #tpu.memory_space<vmem>>, vector<32x128xf32>,
    return
  }
  func.func @transform_0(%arg0: i32) -> (i32, i32) {
    %c0_i32 = arith.constant 0 : i32
    %c0_i32_0 = arith.constant 0 : i32
    return %arg0, %c0_i32 : i32, i32
  }
  func.func @transform_1(%arg0: i32) -> (i32, i32) {
    %c0_i32 = arith.constant 0 : i32
    %c0_i32_0 = arith.constant 0 : i32
    %c0_i32_1 = arith.constant 0 : i32
    return %c0_i32, %c0_i32_0 : i32, i32
  }
  func.func @transform_2(%arg0: i32) -> (i32, i32) {
    %c0_i32 = arith.constant 0 : i32
    %c0_i32_0 = arith.constant 0 : i32
    %c0_i32_1 = arith.constant 0 : i32
    return %c0_i32, %c0_i32_0 : i32, i32
  }
  func.func @transform_3(%arg0: i32) -> (i32, i32) {
    %c0_i32 = arith.constant 0 : i32
    %c0_i32_0 = arith.constant 0 : i32
    return %arg0, %c0_i32 : i32, i32
  }
}

</mosaic_0001>

<llo_original>
// kernel: patch_embed_forward.1
$region0: #{patch_embed_forward.1}
  #allocation0 [shape = 'u32[]', space=smem, size = 0x4, offset = 0x4, fixed_abs, tag = 'smem constant byte address 0x4 - core index']
  #allocation1 [shape = 'u32[72,128]{1,0:T(1,128)}', space=vmem, size = 0x9000, scoped, tag = 'internal scratch']
  %s0 = inlined_call_operand.vmem [shape: bf16[32,64], index: 0, kind: input, shape index: {}]
  %s1 = inlined_call_operand.vmem [shape: bf16[128,64], index: 1, kind: input, shape index: {}]
  %s2 = inlined_call_operand.vmem [shape: f32[1,128], index: 2, kind: input, shape index: {}]
  %s3 = inlined_call_operand.hbm [shape: f32[32,128], index: 3, kind: output, shape index: {}]
  %s4 = sld [smem:[#allocation0]]
  $region22: #{patch_embed_forward.1} parent=0
    _
  %s6 = ssub.s32 1, %s4
  %s7 = scalar_select 0, %s6, %s4
  $region1: #{patch_embed_forward.1} parent=0
    #allocation2 [shape = 'u8[16384]{0}', space=vmem, size = 0x4000, scoped, tag = 'output window, operand 0, single buffered']
    #allocation3 [shape = 's32[1]{0}', space=sflag, size = 0x4, scoped, tag = 'scoped memory for patch_embed_forward.1']
    %8 = vsyncpa [#allocation3], 0
    // Predicated region
    $region2: #{patch_embed_forward.1} parent=1 // pred_check
      _
    $region3: #{patch_embed_forward.1} parent=1 // pred_check_branch
      %10 = sbr.rel (0) target = $region5
    $region4: #{patch_embed_forward.1} parent=1 // pred_region
      _
    $region5: #{patch_embed_forward.1} parent=1 // pred_fallthru
      _
    // Predicated region
    $region6: #{patch_embed_forward.1} parent=1 // pred_check
      _
    $region7: #{patch_embed_forward.1} parent=1 // pred_check_branch
      %12 = sbr.rel (0) target = $region9
    $region8: #{patch_embed_forward.1} parent=1 // pred_region
      _
    $region9: #{patch_embed_forward.1} parent=1 // pred_fallthru
      _
    // Predicated region
    $region10: #{patch_embed_forward.1} parent=1 // pred_check
      _
    $region11: #{patch_embed_forward.1} parent=1 // pred_check_branch
      %14 = sbr.rel (0) target = $region13
    $region12: #{patch_embed_forward.1} parent=1 // pred_region
      _
    $region13: #{patch_embed_forward.1} parent=1 // pred_fallthru
      _
    %v15 = vld [vmem:[%s0] sm:$0xf]
    %v16 = vld [vmem:[%s0 + $0x4] sm:$0xf]
    %v17 = vld [vmem:[%s0 + $0x8] sm:$0xf]
    %v18 = vld [vmem:[%s0 + $0xc] sm:$0xf]
    %v19 = vld [vmem:[%s1] sm:$0xf]
    %v20 = vld [vmem:[%s1 + $0x4] sm:$0xf]
    %v21 = vld [vmem:[%s1 + $0x8] sm:$0xf]
    %v22 = vld [vmem:[%s1 + $0xc] sm:$0xf]
    %v23 = vld [vmem:[%s1 + $0x10] sm:$0xf]
    %v24 = vld [vmem:[%s1 + $0x14] sm:$0xf]
    %v25 = vld [vmem:[%s1 + $0x18] sm:$0xf]
    %v26 = vld [vmem:[%s1 + $0x1c] sm:$0xf]
    %v27 = vld [vmem:[%s1 + $0x20] sm:$0xf]
    %v28 = vld [vmem:[%s1 + $0x24] sm:$0xf]
    %v29 = vld [vmem:[%s1 + $0x28] sm:$0xf]
    %v30 = vld [vmem:[%s1 + $0x2c] sm:$0xf]
    %v31 = vld [vmem:[%s1 + $0x30] sm:$0xf]
    %v32 = vld [vmem:[%s1 + $0x34] sm:$0xf]
    %v33 = vld [vmem:[%s1 + $0x38] sm:$0xf]
    %v34 = vld [vmem:[%s1 + $0x3c] sm:$0xf]
    %v35 = vld [vmem:[%s2] sm:$0x1]
    %v37 = vperm.slane %v35, 0
    %v43 = vunpack.c.l.b16 %v15
    %v44 = vunpack.c.l.b16 %v16
    %v45 = vunpack.c.l.b16 %v17
    %v46 = vunpack.c.l.b16 %v18
    %v47 = vpack.c.b16 %v44, %v43
    %v48 = vpack.c.b16 %v46, %v45
    %v65 = vunpack.c.l.b16 %v19
    %v66 = vunpack.c.l.b16 %v20
    %v67 = vunpack.c.l.b16 %v21
    %v68 = vunpack.c.l.b16 %v22
    %v69 = vunpack.c.l.b16 %v23
    %v70 = vunpack.c.l.b16 %v24
    %v71 = vunpack.c.l.b16 %v25
    %v72 = vunpack.c.l.b16 %v26
    %v73 = vunpack.c.l.b16 %v27
    %v74 = vunpack.c.l.b16 %v28
    %v75 = vunpack.c.l.b16 %v29
    %v76 = vunpack.c.l.b16 %v30
    %v77 = vunpack.c.l.b16 %v31
    %v78 = vunpack.c.l.b16 %v32
    %v79 = vunpack.c.l.b16 %v33
    %v80 = vunpack.c.l.b16 %v34
    %v81 = vpack.c.b16 %v66, %v65
    %v82 = vpack.c.b16 %v68, %v67
    %v83 = vpack.c.b16 %v70, %v69
    %v84 = vpack.c.b16 %v72, %v71
    %v85 = vpack.c.b16 %v74, %v73
    %v86 = vpack.c.b16 %v76, %v75
    %v87 = vpack.c.b16 %v78, %v77
    %v88 = vpack.c.b16 %v80, %v79
    %vm89 = vcmask 523264
    %v91 = vsel %vm89, %v47, 0
    %v94 = vsel %vm89, %v48, 0
    %v97 = vsel %vm89, %v81, 0
    %v100 = vsel %vm89, %v82, 0
    %v103 = vsel %vm89, %v83, 0
    %v106 = vsel %vm89, %v84, 0
    %v109 = vsel %vm89, %v85, 0
    %v112 = vsel %vm89, %v86, 0
    %v115 = vsel %vm89, %v87, 0
    %v118 = vsel %vm89, %v88, 0
    %120 = vmatpush.bf16.xpose.msra.mxu0 %v118
    %121 = vmatpush.bf16.xpose.msra.mxu0 %v115
    %122 = vmatpush.bf16.xpose.msra.mxu0 %v112
    %123 = vmatpush.bf16.xpose.msra.mxu0 %v109
    %124 = vmatpush.bf16.xpose.msra.mxu0 %v106
    %125 = vmatpush.bf16.xpose.msra.mxu0 %v103
    %126 = vmatpush.bf16.xpose.msra.mxu0 %v100
    %127 = vmatpush.bf16.xpose.msra.mxu0 %v97
    %128 = vmatmul.bf16.gmra.mxu0 %v91
    %v129 = vpop.f32.mrf.mxu0
    %v130 = vadd.f32 %v37, %v129
    %v131 = vpop.f32.mrf.mxu0
    %v132 = vadd.f32 %v37, %v131
    %133 = vmatmul.bf16.gmra.mxu0 %v94
    %v134 = vpop.f32.mrf.mxu0
    %v135 = vadd.f32 %v37, %v134
    %v136 = vpop.f32.mrf.mxu0
    %v137 = vadd.f32 %v37, %v136
    %138 = vdwg.mxu0
    %139 = vst [vmem:[#allocation2] sm:$0xff] %v130
    %140 = vst [vmem:[#allocation2 + $0x8] sm:$0xff] %v132
    %141 = vst [vmem:[#allocation2 + $0x10] sm:$0xff] %v135
    %142 = vst [vmem:[#allocation2 + $0x18] sm:$0xff] %v137
    // Predicated region
    $region14: #{patch_embed_forward.1} parent=1 // pred_check
      _
    $region15: #{patch_embed_forward.1} parent=1 // pred_check_branch
      %144 = sbr.rel (0) target = $region17
    $region16: #{patch_embed_forward.1} parent=1 // pred_region
      %146 = vsyncadd [#allocation3], 0
      %s147 = sshll.u32 [#allocation2], 4
      %s148 = int_to_ptr.vmem [resolvable:$true] %s147
      %s149 = sshll.u32 %s3, 4
      %s150 = int_to_ptr.hbm [resolvable:$true] %s149
      %155 = dma.vmem_to_hbm [thread:$0]  %s148, 512, %s150, [#allocation3], 128, 128, 8
    $region17: #{patch_embed_forward.1} parent=1 // pred_fallthru
      _
    // Predicated region
    $region18: #{patch_embed_forward.1} parent=1 // pred_check
      _
    $region19: #{patch_embed_forward.1} parent=1 // pred_check_branch
      %157 = sbr.rel (0) target = $region21
    $region20: #{patch_embed_forward.1} parent=1 // pred_region
      %159 = dma.done [#allocation3], 512
    $region21: #{patch_embed_forward.1} parent=1 // pred_fallthru
      _
    %160 = vsyncpa [#allocation3], 1

</llo_original>
